<compile_context>
chip_gen: v5e
topology: v5e:2x2
jax: 0.10.0
libtpu: 0.0.40
codegen_flags: <defaults>
</compile_context>

<pallas_src>
import functools
import math

import jax
import jax.numpy as jnp
from jax import lax
from jax.experimental import pallas as pl
from jax.experimental.pallas import tpu as pltpu


def _round_up(x, m):
    return ((x + m - 1) // m) * m


def _softplus(x):
    # Numerically safe softplus: log1p(exp(x)) without overflow for large x.
    return jnp.maximum(x, 0.0) + jnp.log1p(jnp.exp(-jnp.abs(x)))


# ---------------------------------------------------------------------------
# Kernels
# ---------------------------------------------------------------------------
def _bayes_linear_sample_kernel(x_ref, wmu_ref, wrho_ref, weps_ref,
                                bmu_ref, brho_ref, beps_ref, o_ref,
                                *, mxu_dtype):
    """One (bm, bn) output tile; grid axis 2 is the in_features reduction."""
    k = pl.program_id(2)

    # Reparameterized weight sample for this (bn, bk) tile.  Sampling math is
    # kept in f32 (v5e's VPU/EUP have no bf16); streams may arrive as bf16.
    sigma = _softplus(wrho_ref[...].astype(jnp.float32))
    w = wmu_ref[...].astype(jnp.float32) + sigma * weps_ref[...].astype(jnp.float32)

    # x:(bm,bk) x w:(bn,bk) contracted on the shared last dim -> (bm,bn).
    # bf16 operands feed the MXU at full rate; accumulation stays f32.
    partial = lax.dot_general(
        x_ref[...].astype(mxu_dtype), w.astype(mxu_dtype),
        dimension_numbers=(((1,), (1,)), ((), ())),
        preferred_element_type=jnp.float32)

    # The f32 output tile is k-invariant -> VMEM-resident accumulator.
    @pl.when(k == 0)
    def _():
        o_ref[...] = partial

    @pl.when(k > 0)
    def _():
        o_ref[...] += partial

    @pl.when(k == pl.num_programs(2) - 1)
    def _():
        # Bias sampling hoisted to the final reduction step only.
        b = (bmu_ref[...].astype(jnp.float32)
             + _softplus(brho_ref[...].astype(jnp.float32))
             * beps_ref[...].astype(jnp.float32))          # (1, bn)
        o_ref[...] += b


def _linear_mu_kernel(x_ref, wmu_ref, bmu_ref, o_ref, *, mxu_dtype):
    """Eval fast path: plain tiled matmul on (weight_mu, bias_mu)."""
    k = pl.program_id(2)

    partial = lax.dot_general(
        x_ref[...].astype(mxu_dtype), wmu_ref[...].astype(mxu_dtype),
        dimension_numbers=(((1,), (1,)), ((), ())),
        preferred_element_type=jnp.float32)

    @pl.when(k == 0)
    def _():
        o_ref[...] = partial

    @pl.when(k > 0)
    def _():
        o_ref[...] += partial

    @pl.when(k == pl.num_programs(2) - 1)
    def _():
        o_ref[...] += bmu_ref[...].astype(jnp.float32)


# ---------------------------------------------------------------------------
# Tiling / padding helpers
# ---------------------------------------------------------------------------
_VMEM_BUDGET = 40 * 1024 * 1024      # double-buffered target; fits v7x's 64 MiB
_VMEM_LIMIT_CAP = 56 * 1024 * 1024   # never ask Mosaic for more than this


def _largest_divisor_leq(n, cap):
    """Largest divisor of n that is <= cap (>= 1)."""
    cap = max(1, min(n, cap))
    for d in range(cap, 0, -1):
        if n % d == 0:
            return d
    return 1


def _pick_tiles(batch, out_f, in_f, n_wstreams):
    """Divisor-based, (8,128)-aligned tiles sized from the VMEM budget."""
    m_pad = _round_up(max(batch, 1), 8)
    n_pad = _round_up(out_f, 128)
    k_pad = _round_up(in_f, 128)
    m_units, n_units, k_units = m_pad // 8, n_pad // 128, k_pad // 128

    # bk/bn: largest divisors of the aligned dims under generous caps.
    bk = 128 * _largest_divisor_leq(k_units, 2048 // 128)
    bn = 128 * _largest_divisor_leq(n_units, 512 // 128)

    # bm from the remaining double-buffered VMEM budget (f32 worst case).
    # bm is the weight-reuse knob: weight streams are re-DMA'd once per i tile.
    fixed = 2 * n_wstreams * (bn * bk + bn) * 4          # weight + bias streams
    per_row = 2 * (bk + bn) * 4                          # x tile + output tile
    bm_cap = max(8, (_VMEM_BUDGET - fixed) // per_row)
    bm = 8 * _largest_divisor_leq(m_units, min(bm_cap, 1024) // 8)

    # v7x has 2 TensorCores: make sure the two "parallel" axes have >= 2 tiles.
    if (m_pad // bm) * (n_pad // bn) == 1:
        if n_units >= 2:
            bn = 128 * _largest_divisor_leq(n_units, n_units // 2)
        elif m_units >= 2:
            bm = 8 * _largest_divisor_leq(m_units, m_units // 2)

    return bm, bn, bk, m_pad, n_pad, k_pad


def _pad2(a, rows, cols):
    pr, pc = rows - a.shape[0], cols - a.shape[1]
    if pr == 0 and pc == 0:
        return a
    return jnp.pad(a, ((0, pr), (0, pc)))


# ---------------------------------------------------------------------------
# Wrapper
# ---------------------------------------------------------------------------
def bayesian_linear_forward(x, weight_mu, weight_rho, bias_mu, bias_rho,
                            w_eps, b_eps, sample=True, mxu_dtype=jnp.bfloat16):
    """Pallas-fused forward of BayesianLinear.

    sample=True : weight = mu + softplus(rho) * eps  (training / sampling path)
    sample=False: weight = mu, bias = mu             (eval fast path, mu-only kernel)
    mxu_dtype   : dtype the matmul operands are cast to (bf16 default; f32
                  available for bit-accurate comparisons).  Accumulation and
                  the sampling math are always f32.
    """
    batch, in_f = x.shape
    out_f = weight_mu.shape[0]
    n_wstreams = 3 if sample else 1

    bm, bn, bk, M, N, K = _pick_tiles(batch, out_f, in_f, n_wstreams)
    grid = (M // bm, N // bn, K // bk)

    # Lane-dense, (8,128)-aligned operands.  Zero padding is exact:
    # padded mu/rho/eps -> w = 0 + softplus(0)*0 = 0, padded x columns are 0,
    # padded output rows/cols are sliced off below.
    x_p = _pad2(x, M, K)
    wmu_p = _pad2(weight_mu, N, K)
    bmu_p = _pad2(bias_mu.reshape(1, out_f), 1, N)

    x_spec = pl.BlockSpec((bm, bk), lambda i, j, k: (i, k))
    w_spec = pl.BlockSpec((bn, bk), lambda i, j, k: (j, k))
    b_spec = pl.BlockSpec((1, bn), lambda i, j, k: (0, j))
    o_spec = pl.BlockSpec((bm, bn), lambda i, j, k: (i, j))

    # Real double-buffered VMEM budget (f32 upper bound), capped for v7x.
    vmem_bytes = 4 * (2 * (bm * bk + n_wstreams * (bn * bk + bn)) + 2 * bm * bn)
    vmem_limit = int(min(_VMEM_LIMIT_CAP,
                         max(32 * 1024 * 1024, vmem_bytes + 4 * 1024 * 1024)))
    compiler_params = pltpu.CompilerParams(
        dimension_semantics=("parallel", "parallel", "arbitrary"),
        vmem_limit_bytes=vmem_limit,
    )

    if sample:
        wrho_p = _pad2(weight_rho, N, K)
        weps_p = _pad2(w_eps, N, K)
        brho_p = _pad2(bias_rho.reshape(1, out_f), 1, N)
        beps_p = _pad2(b_eps.reshape(1, out_f), 1, N)
        kernel = functools.partial(_bayes_linear_sample_kernel, mxu_dtype=mxu_dtype)
        out_p = pl.pallas_call(
            kernel,
            out_shape=jax.ShapeDtypeStruct((M, N), jnp.float32),
            grid_spec=pltpu.PrefetchScalarGridSpec(
                num_scalar_prefetch=0,
                grid=grid,
                in_specs=[x_spec, w_spec, w_spec, w_spec, b_spec, b_spec, b_spec],
                out_specs=o_spec),
            compiler_params=compiler_params,
        )(x_p, wmu_p, wrho_p, weps_p, bmu_p, brho_p, beps_p)
    else:
        # Eval fast path: no rho/eps streams, no softplus.
        kernel = functools.partial(_linear_mu_kernel, mxu_dtype=mxu_dtype)
        out_p = pl.pallas_call(
            kernel,
            out_shape=jax.ShapeDtypeStruct((M, N), jnp.float32),
            grid_spec=pltpu.PrefetchScalarGridSpec(
                num_scalar_prefetch=0,
                grid=grid,
                in_specs=[x_spec, w_spec, b_spec],
                out_specs=o_spec),
            compiler_params=compiler_params,
        )(x_p, wmu_p, bmu_p)

    return out_p[:batch, :out_f]


# ---------------------------------------------------------------------------
# Plain-JAX glue reproducing the attribute side-effects of the PyTorch module
# (log_prior, log_variational_posterior) — scalar reductions, not part of the
# returned tensor.
# TODO(synk): fuse these reductions into the matmul kernel's weight tiles to
#             avoid re-streaming mu/rho/eps from HBM during training.
# ---------------------------------------------------------------------------
def _gaussian_log_prob(x, mu, sigma):
    return jnp.sum(-0.5 * math.log(2.0 * math.pi)
                   - jnp.log(sigma)
                   - (x - mu) ** 2 / (2.0 * sigma ** 2))


def _scale_mixture_log_prob(x, pi, sigma1, sigma2):
    def normal_logpdf(v, s):
        return -jnp.log(s * math.sqrt(2.0 * math.pi)) - v ** 2 / (2.0 * s ** 2)
    # logaddexp form of log(pi*p1 + (1-pi)*p2): same value, no underflow to -inf.
    return jnp.sum(jnp.logaddexp(math.log(pi) + normal_logpdf(x, sigma1),
                                 math.log(1.0 - pi) + normal_logpdf(x, sigma2)))


def bayesian_linear_log_probs(weight_mu, weight_rho, bias_mu, bias_rho,
                              w_eps, b_eps):
    w_sigma = _softplus(weight_rho)
    b_sigma = _softplus(bias_rho)
    weight = weight_mu + w_sigma * w_eps
    bias = bias_mu + b_sigma * b_eps
    PI, S1, S2 = 0.5, math.exp(-0.0), math.exp(-6.0)
    log_prior = (_scale_mixture_log_prob(weight, PI, S1, S2)
                 + _scale_mixture_log_prob(bias, PI, S1, S2))
    log_var_post = (_gaussian_log_prob(weight, weight_mu, w_sigma)
                    + _gaussian_log_prob(bias, bias_mu, b_sigma))
    return log_prior, log_var_post


# ---------------------------------------------------------------------------
# Demo / self-check
# ---------------------------------------------------------------------------
def _ref_forward(x, wmu, wrho, bmu, brho, w_eps, b_eps, sample=True,
                 mxu_dtype=jnp.bfloat16):
    """Matched-precision JAX reference (same operand dtype as the kernel)."""
    if sample:
        w = wmu + _softplus(wrho) * w_eps
        b = bmu + _softplus(brho) * b_eps
    else:
        w, b = wmu, bmu
    prec = lax.Precision.HIGHEST if mxu_dtype == jnp.float32 else lax.Precision.DEFAULT
    y = lax.dot_general(x.astype(mxu_dtype), w.astype(mxu_dtype),
                        dimension_numbers=(((1,), (1,)), ((), ())),
                        preferred_element_type=jnp.float32,
                        precision=prec)
    return y + b


def _run_case(key, batch, in_features, out_features, check_f32_path=False):
    ks = jax.random.split(key, 7)
    x = jax.random.normal(ks[0], (batch, in_features), dtype=jnp.float32)
    weight_mu = jax.random.uniform(ks[1], (out_features, in_features),
                                   minval=-0.2, maxval=0.2, dtype=jnp.float32)
    weight_rho = jax.random.uniform(ks[2], (out_features, in_features),
                                    minval=-5.0, maxval=-4.0, dtype=jnp.float32)
    bias_mu = jax.random.uniform(ks[3], (out_features,),
                                 minval=-0.2, maxval=0.2, dtype=jnp.float32)
    bias_rho = jax.random.uniform(ks[4], (out_features,),
                                  minval=-5.0, maxval=-4.0, dtype=jnp.float32)
    w_eps = jax.random.normal(ks[5], (out_features, in_features), dtype=jnp.float32)
    b_eps = jax.random.normal(ks[6], (out_features,), dtype=jnp.float32)

    args = (x, weight_mu, weight_rho, bias_mu, bias_rho, w_eps, b_eps)

    # Default (bf16-MXU) sampling path vs a matched-precision reference.
    y = jax.block_until_ready(bayesian_linear_forward(*args, sample=True))
    y_ref = _ref_forward(*args, sample=True, mxu_dtype=jnp.bfloat16)
    assert jnp.allclose(y, y_ref, atol=1e-2, rtol=1e-2), "sample path mismatch"

    # Eval fast path (weight = mu, bias = mu).
    y_eval = jax.block_until_ready(bayesian_linear_forward(*args, sample=False))
    y_eval_ref = _ref_forward(*args, sample=False, mxu_dtype=jnp.bfloat16)
    assert jnp.allclose(y_eval, y_eval_ref, atol=1e-2, rtol=1e-2), "eval path mismatch"

    if check_f32_path:
        # Strict anchor: f32 MXU operands vs full-f32 reference.
        y32 = jax.block_until_ready(
            bayesian_linear_forward(*args, sample=True, mxu_dtype=jnp.float32))
        y32_ref = _ref_forward(*args, sample=True, mxu_dtype=jnp.float32)
        assert jnp.allclose(y32, y32_ref, atol=1e-4, rtol=1e-4), "f32 path mismatch"

    # Attribute side-effects of the PyTorch forward.
    lp, lvp = bayesian_linear_log_probs(weight_mu, weight_rho, bias_mu, bias_rho,
                                        w_eps, b_eps)
    jax.block_until_ready((lp, lvp))


if __name__ == "__main__":
    key = jax.random.PRNGKey(0)
    k1, k2 = jax.random.split(key)

    # Small demo shape matching the module's defaults; also checks the exact
    # f32-MXU path against the f32 reference.
    _run_case(k1, batch=8, in_features=32, out_features=16, check_f32_path=True)
    # Multi-tile shape: exercises the divisor-based tiling (bk=1280, grid_k=2),
    # the two-TensorCore N split (grid_j=3), and the k-reduction accumulation.
    _run_case(k2, batch=48, in_features=2560, out_features=320)

    print("KERNEL_OK")
</pallas_src>

<mosaic_0001>
module attributes {stable_mosaic.version = 11 : i64} {
  func.func @_bayes_linear_sample_kernel(%arg0: i32, %arg1: i32, %arg2: i32, %arg3: memref<8x128xf32, #tpu.memory_space<vmem>>, %arg4: memref<128x128xf32, #tpu.memory_space<vmem>>, %arg5: memref<128x128xf32, #tpu.memory_space<vmem>>, %arg6: memref<128x128xf32, #tpu.memory_space<vmem>>, %arg7: memref<1x128xf32, #tpu.memory_space<vmem>>, %arg8: memref<1x128xf32, #tpu.memory_space<vmem>>, %arg9: memref<1x128xf32, #tpu.memory_space<vmem>>, %arg10: memref<8x128xf32, #tpu.memory_space<vmem>>) attributes {dimension_semantics = [#tpu.dimension_semantics<parallel>, #tpu.dimension_semantics<parallel>, #tpu.dimension_semantics<arbitrary>], iteration_bounds = array<i64: 1, 1, 1>, scalar_prefetch = 0 : i64, scratch_operands = 0 : i64, tpu.core_type = #tpu.core_type<tc>, window_params = [{transform_indices = @transform_0, window_bounds = array<i64: 8, 128>}, {transform_indices = @transform_1, window_bounds = array<i64: 128, 128>}, {transform_indices = @transform_2, window_bounds = array<i64: 128, 128>}, {transform_indices = @transform_3, window_bounds = array<i64: 128, 128>}, {transform_indices = @transform_4, window_bounds = array<i64: 1, 128>}, {transform_indices = @transform_5, window_bounds = array<i64: 1, 128>}, {transform_indices = @transform_6, window_bounds = array<i64: 1, 128>}, {transform_indices = @transform_7, window_bounds = array<i64: 8, 128>}]} {
    %c0 = arith.constant 0 : index
    %c0_0 = arith.constant 0 : index
    %0 = vector.load %arg5[%c0, %c0_0] : memref<128x128xf32, #tpu.memory_space<vmem>>, vector<128x128xf32>
    %cst = arith.constant 0.000000e+00 : f32
    %1 = vector.broadcast %cst : f32 to vector<128x128xf32>
    %2 = arith.maximumf %0, %1 : vector<128x128xf32>
    %3 = math.absf %0 : vector<128x128xf32>
    %cst_1 = arith.constant 0.000000e+00 : f32
    %4 = vector.broadcast %cst_1 : f32 to vector<128x128xf32>
    %5 = arith.subf %4, %3 : vector<128x128xf32>
    %6 = math.exp %5 : vector<128x128xf32>
    %7 = math.log1p %6 : vector<128x128xf32>
    %8 = arith.addf %2, %7 : vector<128x128xf32>
    %c0_2 = arith.constant 0 : index
    %c0_3 = arith.constant 0 : index
    %9 = vector.load %arg4[%c0_2, %c0_3] : memref<128x128xf32, #tpu.memory_space<vmem>>, vector<128x128xf32>
    %c0_4 = arith.constant 0 : index
    %c0_5 = arith.constant 0 : index
    %10 = vector.load %arg6[%c0_4, %c0_5] : memref<128x128xf32, #tpu.memory_space<vmem>>, vector<128x128xf32>
    %11 = arith.mulf %8, %10 : vector<128x128xf32>
    %12 = arith.addf %9, %11 : vector<128x128xf32>
    %c0_6 = arith.constant 0 : index
    %c0_7 = arith.constant 0 : index
    %13 = vector.load %arg3[%c0_6, %c0_7] : memref<8x128xf32, #tpu.memory_space<vmem>>, vector<8x128xf32>
    %14 = arith.truncf %13 : vector<8x128xf32> to vector<8x128xbf16>
    %15 = arith.truncf %12 : vector<128x128xf32> to vector<128x128xbf16>
    %cst_8 = arith.constant dense<0.000000e+00> : vector<8x128xf32>
    %16 = tpu.matmul %14, %15, %cst_8 {dimension_numbers = #tpu.dot_dimension_numbers<[1], [1], [0], [0], [0, 0, 1, 0], [], []>} : vector<8x128xbf16>, vector<128x128xbf16>, vector<8x128xf32> -> vector<8x128xf32>
    %c0_i32 = arith.constant 0 : i32
    %17 = arith.cmpi eq, %arg2, %c0_i32 : i32
    %18 = arith.extui %17 : i1 to i32
    %c0_i32_9 = arith.constant 0 : i32
    %19 = arith.cmpi ne, %18, %c0_i32_9 : i32
    scf.if %19 {
      %c0_14 = arith.constant 0 : index
      %c0_15 = arith.constant 0 : index
      %26 = vector.load %arg10[%c0_14, %c0_15] : memref<8x128xf32, #tpu.memory_space<vmem>>, vector<8x128xf32>
      tpu.vector_store %arg10[%c0_14, %c0_15], %16 {strides = array<i32>} : memref<8x128xf32, #tpu.memory_space<vmem>>, vector<8x128xf32>,
    } else {
    }
    %c0_i32_10 = arith.constant 0 : i32
    %20 = arith.cmpi sgt, %arg2, %c0_i32_10 : i32
    %21 = arith.extui %20 : i1 to i32
    %c0_i32_11 = arith.constant 0 : i32
    %22 = arith.cmpi ne, %21, %c0_i32_11 : i32
    scf.if %22 {
      %c0_14 = arith.constant 0 : index
      %c0_15 = arith.constant 0 : index
      %26 = vector.load %arg10[%c0_14, %c0_15] : memref<8x128xf32, #tpu.memory_space<vmem>>, vector<8x128xf32>
      %27 = arith.addf %26, %16 : vector<8x128xf32>
      %c0_16 = arith.constant 0 : index
      %c0_17 = arith.constant 0 : index
      %28 = vector.load %arg10[%c0_16, %c0_17] : memref<8x128xf32, #tpu.memory_space<vmem>>, vector<8x128xf32>
      tpu.vector_store %arg10[%c0_16, %c0_17], %27 {strides = array<i32>} : memref<8x128xf32, #tpu.memory_space<vmem>>, vector<8x128xf32>,
    } else {
    }
    %c0_i32_12 = arith.constant 0 : i32
    %23 = arith.cmpi eq, %arg2, %c0_i32_12 : i32
    %24 = arith.extui %23 : i1 to i32
    %c0_i32_13 = arith.constant 0 : i32
    %25 = arith.cmpi ne, %24, %c0_i32_13 : i32
    scf.if %25 {
      %c0_14 = arith.constant 0 : index
      %c0_15 = arith.constant 0 : index
      %26 = vector.load %arg7[%c0_14, %c0_15] : memref<1x128xf32, #tpu.memory_space<vmem>>, vector<1x128xf32>
      %c0_16 = arith.constant 0 : index
      %c0_17 = arith.constant 0 : index
      %27 = vector.load %arg8[%c0_16, %c0_17] : memref<1x128xf32, #tpu.memory_space<vmem>>, vector<1x128xf32>
      %cst_18 = arith.constant 0.000000e+00 : f32
      %28 = vector.broadcast %cst_18 : f32 to vector<1x128xf32>
      %29 = arith.maximumf %27, %28 : vector<1x128xf32>
      %30 = math.absf %27 : vector<1x128xf32>
      %cst_19 = arith.constant 0.000000e+00 : f32
      %31 = vector.broadcast %cst_19 : f32 to vector<1x128xf32>
      %32 = arith.subf %31, %30 : vector<1x128xf32>
      %33 = math.exp %32 : vector<1x128xf32>
      %34 = math.log1p %33 : vector<1x128xf32>
      %35 = arith.addf %29, %34 : vector<1x128xf32>
      %c0_20 = arith.constant 0 : index
      %c0_21 = arith.constant 0 : index
      %36 = vector.load %arg9[%c0_20, %c0_21] : memref<1x128xf32, #tpu.memory_space<vmem>>, vector<1x128xf32>
      %37 = arith.mulf %35, %36 : vector<1x128xf32>
      %38 = arith.addf %26, %37 : vector<1x128xf32>
      %c0_22 = arith.constant 0 : index
      %c0_23 = arith.constant 0 : index
      %39 = vector.load %arg10[%c0_22, %c0_23] : memref<8x128xf32, #tpu.memory_space<vmem>>, vector<8x128xf32>
      %40 = vector.broadcast %38 : vector<1x128xf32> to vector<8x128xf32>
      %41 = arith.addf %39, %40 : vector<8x128xf32>
      %c0_24 = arith.constant 0 : index
      %c0_25 = arith.constant 0 : index
      %42 = vector.load %arg10[%c0_24, %c0_25] : memref<8x128xf32, #tpu.memory_space<vmem>>, vector<8x128xf32>
      tpu.vector_store %arg10[%c0_24, %c0_25], %41 {strides = array<i32>} : memref<8x128xf32, #tpu.memory_space<vmem>>, vector<8x128xf32>,
    } else {
    }
    return
  }
  func.func @transform_0(%arg0: i32, %arg1: i32, %arg2: i32) -> (i32, i32) {
    %c0_i32 = arith.constant 0 : i32
    return %arg0, %arg2 : i32, i32
  }
  func.func @transform_1(%arg0: i32, %arg1: i32, %arg2: i32) -> (i32, i32) {
    %c0_i32 = arith.constant 0 : i32
    return %arg1, %arg2 : i32, i32
  }
  func.func @transform_2(%arg0: i32, %arg1: i32, %arg2: i32) -> (i32, i32) {
    %c0_i32 = arith.constant 0 : i32
    return %arg1, %arg2 : i32, i32
  }
  func.func @transform_3(%arg0: i32, %arg1: i32, %arg2: i32) -> (i32, i32) {
    %c0_i32 = arith.constant 0 : i32
    return %arg1, %arg2 : i32, i32
  }
  func.func @transform_4(%arg0: i32, %arg1: i32, %arg2: i32) -> (i32, i32) {
    %c0_i32 = arith.constant 0 : i32
    %c0_i32_0 = arith.constant 0 : i32
    return %c0_i32, %arg1 : i32, i32
  }
  func.func @transform_5(%arg0: i32, %arg1: i32, %arg2: i32) -> (i32, i32) {
    %c0_i32 = arith.constant 0 : i32
    %c0_i32_0 = arith.constant 0 : i32
    return %c0_i32, %arg1 : i32, i32
  }
  func.func @transform_6(%arg0: i32, %arg1: i32, %arg2: i32) -> (i32, i32) {
    %c0_i32 = arith.constant 0 : i32
    %c0_i32_0 = arith.constant 0 : i32
    return %c0_i32, %arg1 : i32, i32
  }
  func.func @transform_7(%arg0: i32, %arg1: i32, %arg2: i32) -> (i32, i32) {
    %c0_i32 = arith.constant 0 : i32
    return %arg0, %arg1 : i32, i32
  }
}

</mosaic_0001>

<llo_original>
// kernel: tpu_custom_call.1
$region0: #{tpu_custom_call.1}
  #allocation0 [shape = 'u32[]', space=smem, size = 0x4, offset = 0x4, fixed_abs, tag = 'smem constant byte address 0x4 - core index']
  #allocation1 [shape = 'u32[72,128]{1,0:T(1,128)}', space=vmem, size = 0x9000, scoped, tag = 'internal scratch']
  %s0 = inlined_call_operand.hbm [shape: f32[8,128], index: 0, kind: input, shape index: {}]
  %s1 = inlined_call_operand.hbm [shape: f32[128,128], index: 1, kind: input, shape index: {}]
  %s2 = inlined_call_operand.hbm [shape: f32[128,128], index: 2, kind: input, shape index: {}]
  %s3 = inlined_call_operand.hbm [shape: f32[128,128], index: 3, kind: input, shape index: {}]
  %s4 = inlined_call_operand.vmem [shape: f32[1,128], index: 4, kind: input, shape index: {}]
  %s5 = inlined_call_operand.vmem [shape: f32[1,128], index: 5, kind: input, shape index: {}]
  %s6 = inlined_call_operand.vmem [shape: f32[1,128], index: 6, kind: input, shape index: {}]
  %s7 = inlined_call_operand.hbm [shape: f32[8,128], index: 7, kind: output, shape index: {}]
  %s8 = sld [smem:[#allocation0]]
  $region66: #{tpu_custom_call.1} parent=0
    _
  %s10 = ssub.s32 1, %s8
  %s11 = scalar_select 0, %s10, %s8
  $region1: #{tpu_custom_call.1} parent=0
    #allocation2 [shape = 'u8[4096]{0}', space=vmem, size = 0x1000, scoped, tag = 'input window, operand 0, single buffered']
    #allocation3 [shape = 's32[1]{0}', space=sflag, size = 0x4, scoped, tag = 'scoped memory for tpu_custom_call.1']
    #allocation4 [shape = 's32[1]{0}', space=sflag, size = 0x4, scoped, tag = 'scoped memory for tpu_custom_call.1']
    #allocation5 [shape = 'u8[65536]{0}', space=vmem, size = 0x10000, scoped, tag = 'input window, operand 1, single buffered']
    #allocation6 [shape = 's32[1]{0}', space=sflag, size = 0x4, scoped, tag = 'scoped memory for tpu_custom_call.1']
    #allocation7 [shape = 'u8[65536]{0}', space=vmem, size = 0x10000, scoped, tag = 'input window, operand 2, single buffered']
    #allocation8 [shape = 'u8[65536]{0}', space=vmem, size = 0x10000, scoped, tag = 'input window, operand 3, single buffered']
    #allocation9 [shape = 's32[1]{0}', space=sflag, size = 0x4, scoped, tag = 'scoped memory for tpu_custom_call.1']
    #allocation10 [shape = 'u8[4096]{0}', space=vmem, size = 0x1000, scoped, tag = 'output window, operand 0, single buffered']
    %12 = vsyncpa [#allocation3], 0
    %13 = vsyncpa [#allocation6], 0
    %14 = vsyncpa [#allocation9], 0
    %15 = vsyncpa [#allocation4], 0
    // Predicated region
    $region2: #{tpu_custom_call.1} parent=1 // pred_check
      _
    $region3: #{tpu_custom_call.1} parent=1 // pred_check_branch
      %17 = sbr.rel (0) target = $region5
    $region4: #{tpu_custom_call.1} parent=1 // pred_region
      %19 = vsyncadd [#allocation3], 0
      %s21 = sshll.u32 %s0, 4
      %s22 = int_to_ptr.hbm [resolvable:$true] %s21
      %s23 = sshll.u32 [#allocation2], 4
      %s24 = int_to_ptr.vmem [resolvable:$true] %s23
      %26 = dma.hbm_to_vmem [thread:$0]  %s22, 128, %s24, [#allocation3]
    $region5: #{tpu_custom_call.1} parent=1 // pred_fallthru
      _
    // Predicated region
    $region6: #{tpu_custom_call.1} parent=1 // pred_check
      _
    $region7: #{tpu_custom_call.1} parent=1 // pred_check_branch
      %28 = sbr.rel (0) target = $region9
    $region8: #{tpu_custom_call.1} parent=1 // pred_region
      %30 = vsyncadd [#allocation6], 0
      %s31 = sshll.u32 %s1, 4
      %s32 = int_to_ptr.hbm [resolvable:$true] %s31
      %s33 = sshll.u32 [#allocation5], 4
      %s34 = int_to_ptr.vmem [resolvable:$true] %s33
      %39 = dma.hbm_to_vmem [thread:$0]  %s32, 2048, %s34, [#allocation6], 128, 128, 8
    $region9: #{tpu_custom_call.1} parent=1 // pred_fallthru
      _
    // Predicated region
    $region10: #{tpu_custom_call.1} parent=1 // pred_check
      _
    $region11: #{tpu_custom_call.1} parent=1 // pred_check_branch
      %41 = sbr.rel (0) target = $region13
    $region12: #{tpu_custom_call.1} parent=1 // pred_region
      %43 = vsyncadd [#allocation6], 0
      %s44 = sshll.u32 %s2, 4
      %s45 = int_to_ptr.hbm [resolvable:$true] %s44
      %s46 = sshll.u32 [#allocation7], 4
      %s47 = int_to_ptr.vmem [resolvable:$true] %s46
      %52 = dma.hbm_to_vmem [thread:$0]  %s45, 2048, %s47, [#allocation6], 128, 128, 8
    $region13: #{tpu_custom_call.1} parent=1 // pred_fallthru
      _
    // Predicated region
    $region14: #{tpu_custom_call.1} parent=1 // pred_check
      _
    $region15: #{tpu_custom_call.1} parent=1 // pred_check_branch
      %54 = sbr.rel (0) target = $region17
    $region16: #{tpu_custom_call.1} parent=1 // pred_region
      %56 = vsyncadd [#allocation9], 0
      %s57 = sshll.u32 %s3, 4
      %s58 = int_to_ptr.hbm [resolvable:$true] %s57
      %s59 = sshll.u32 [#allocation8], 4
      %s60 = int_to_ptr.vmem [resolvable:$true] %s59
      %65 = dma.hbm_to_vmem [thread:$0]  %s58, 2048, %s60, [#allocation9], 128, 128, 8
    $region17: #{tpu_custom_call.1} parent=1 // pred_fallthru
      _
    // Predicated region
    $region18: #{tpu_custom_call.1} parent=1 // pred_check
      _
    $region19: #{tpu_custom_call.1} parent=1 // pred_check_branch
      %67 = sbr.rel (0) target = $region21
    $region20: #{tpu_custom_call.1} parent=1 // pred_region
      _
    $region21: #{tpu_custom_call.1} parent=1 // pred_fallthru
      _
    // Predicated region
    $region22: #{tpu_custom_call.1} parent=1 // pred_check
      _
    $region23: #{tpu_custom_call.1} parent=1 // pred_check_branch
      %69 = sbr.rel (0) target = $region25
    $region24: #{tpu_custom_call.1} parent=1 // pred_region
      _
    $region25: #{tpu_custom_call.1} parent=1 // pred_fallthru
      _
    // Predicated region
    $region26: #{tpu_custom_call.1} parent=1 // pred_check
      _
    $region27: #{tpu_custom_call.1} parent=1 // pred_check_branch
      %71 = sbr.rel (0) target = $region29
    $region28: #{tpu_custom_call.1} parent=1 // pred_region
      _
    $region29: #{tpu_custom_call.1} parent=1 // pred_fallthru
      _
    // Predicated region
    $region30: #{tpu_custom_call.1} parent=1 // pred_check
      _
    $region31: #{tpu_custom_call.1} parent=1 // pred_check_branch
      %73 = sbr.rel (0) target = $region33
    $region32: #{tpu_custom_call.1} parent=1 // pred_region
      %75 = dma.done [#allocation3], 128
    $region33: #{tpu_custom_call.1} parent=1 // pred_fallthru
      _
    // Predicated region
    $region34: #{tpu_custom_call.1} parent=1 // pred_check
      _
    $region35: #{tpu_custom_call.1} parent=1 // pred_check_branch
      %77 = sbr.rel (0) target = $region37
    $region36: #{tpu_custom_call.1} parent=1 // pred_region
      %79 = dma.done [#allocation6], 2048
    $region37: #{tpu_custom_call.1} parent=1 // pred_fallthru
      _
    // Predicated region
    $region38: #{tpu_custom_call.1} parent=1 // pred_check
      _
    $region39: #{tpu_custom_call.1} parent=1 // pred_check_branch
      %81 = sbr.rel (0) target = $region41
    $region40: #{tpu_custom_call.1} parent=1 // pred_region
      %83 = dma.done [#allocation6], 2048
    $region41: #{tpu_custom_call.1} parent=1 // pred_fallthru
      _
    // Predicated region
    $region42: #{tpu_custom_call.1} parent=1 // pred_check
      _
    $region43: #{tpu_custom_call.1} parent=1 // pred_check_branch
      %85 = sbr.rel (0) target = $region45
    $region44: #{tpu_custom_call.1} parent=1 // pred_region
      %87 = dma.done [#allocation9], 2048
    $region45: #{tpu_custom_call.1} parent=1 // pred_fallthru
      _
    %v88 = vld [vmem:[#allocation7] sm:$0xff]
    %v89 = vld [vmem:[#allocation7 + $0x8] sm:$0xff]
    %v90 = vld [vmem:[#allocation7 + $0x10] sm:$0xff]
    %v91 = vld [vmem:[#allocation7 + $0x18] sm:$0xff]
    %v92 = vld [vmem:[#allocation7 + $0x20] sm:$0xff]
    %v93 = vld [vmem:[#allocation7 + $0x28] sm:$0xff]
    %v94 = vld [vmem:[#allocation7 + $0x30] sm:$0xff]
    %v95 = vld [vmem:[#allocation7 + $0x38] sm:$0xff]
    %v96 = vld [vmem:[#allocation7 + $0x40] sm:$0xff]
    %v97 = vld [vmem:[#allocation7 + $0x48] sm:$0xff]
    %v98 = vld [vmem:[#allocation7 + $0x50] sm:$0xff]
    %v99 = vld [vmem:[#allocation7 + $0x58] sm:$0xff]
    %v100 = vld [vmem:[#allocation7 + $0x60] sm:$0xff]
    %v101 = vld [vmem:[#allocation7 + $0x68] sm:$0xff]
    %v102 = vld [vmem:[#allocation7 + $0x70] sm:$0xff]
    %v103 = vld [vmem:[#allocation7 + $0x78] sm:$0xff]
    %v104 = vmax.f32 %v88, 0.0
    %v105 = vmax.f32 %v89, 0.0
    %v106 = vmax.f32 %v90, 0.0
    %v107 = vmax.f32 %v91, 0.0
    %v108 = vmax.f32 %v92, 0.0
    %v109 = vmax.f32 %v93, 0.0
    %v110 = vmax.f32 %v94, 0.0
    %v111 = vmax.f32 %v95, 0.0
    %v112 = vmax.f32 %v96, 0.0
    %v113 = vmax.f32 %v97, 0.0
    %v114 = vmax.f32 %v98, 0.0
    %v115 = vmax.f32 %v99, 0.0
    %v116 = vmax.f32 %v100, 0.0
    %v117 = vmax.f32 %v101, 0.0
    %v118 = vmax.f32 %v102, 0.0
    %v119 = vmax.f32 %v103, 0.0
    %v120 = vand.u32 2147483647, %v88
    %v121 = vand.u32 2147483647, %v89
    %v122 = vand.u32 2147483647, %v90
    %v123 = vand.u32 2147483647, %v91
    %v124 = vand.u32 2147483647, %v92
    %v125 = vand.u32 2147483647, %v93
    %v126 = vand.u32 2147483647, %v94
    %v127 = vand.u32 2147483647, %v95
    %v128 = vand.u32 2147483647, %v96
    %v129 = vand.u32 2147483647, %v97
    %v130 = vand.u32 2147483647, %v98
    %v131 = vand.u32 2147483647, %v99
    %v132 = vand.u32 2147483647, %v100
    %v133 = vand.u32 2147483647, %v101
    %v134 = vand.u32 2147483647, %v102
    %v135 = vand.u32 2147483647, %v103
    %v136 = vsub.f32 0.0, %v120
    %v137 = vsub.f32 0.0, %v121
    %v138 = vsub.f32 0.0, %v122
    %v139 = vsub.f32 0.0, %v123
    %v140 = vsub.f32 0.0, %v124
    %v141 = vsub.f32 0.0, %v125
    %v142 = vsub.f32 0.0, %v126
    %v143 = vsub.f32 0.0, %v127
    %v144 = vsub.f32 0.0, %v128
    %v145 = vsub.f32 0.0, %v129
    %v146 = vsub.f32 0.0, %v130
    %v147 = vsub.f32 0.0, %v131
    %v148 = vsub.f32 0.0, %v132
    %v149 = vsub.f32 0.0, %v133
    %v150 = vsub.f32 0.0, %v134
    %v151 = vsub.f32 0.0, %v135
    %v152 = vmul.f32 %v136, 1.442695
    %v153 = vpow.pop %v152
    %v154 = vmul.f32 %v137, 1.442695
    %v155 = vpow.pop %v154
    %v156 = vmul.f32 %v138, 1.442695
    %v157 = vpow.pop %v156
    %v158 = vmul.f32 %v139, 1.442695
    %v159 = vpow.pop %v158
    %v160 = vmul.f32 %v140, 1.442695
    %v161 = vpow.pop %v160
    %v162 = vmul.f32 %v141, 1.442695
    %v163 = vpow.pop %v162
    %v164 = vmul.f32 %v142, 1.442695
    %v165 = vpow.pop %v164
    %v166 = vmul.f32 %v143, 1.442695
    %v167 = vpow.pop %v166
    %v168 = vmul.f32 %v144, 1.442695
    %v169 = vpow.pop %v168
    %v170 = vmul.f32 %v145, 1.442695
    %v171 = vpow.pop %v170
    %v172 = vmul.f32 %v146, 1.442695
    %v173 = vpow.pop %v172
    %v174 = vmul.f32 %v147, 1.442695
    %v175 = vpow.pop %v174
    %v176 = vmul.f32 %v148, 1.442695
    %v177 = vpow.pop %v176
    %v178 = vmul.f32 %v149, 1.442695
    %v179 = vpow.pop %v178
    %v180 = vmul.f32 %v150, 1.442695
    %v181 = vpow.pop %v180
    %v182 = vmul.f32 %v151, 1.442695
    %v183 = vpow.pop %v182
    %v184 = vadd.f32 %v153, 1.0
    %v185 = vlog2.pop %v184
    %v186 = vmul.f32 %v185, 0.6931472
    %v187 = vmul.f32 -0.5, %v153
    %v188 = vadd.f32 %v187, 1.0
    %v189 = vmul.f32 %v188, %v153
    %v190 = vand.u32 2147483647, %v153
    %vm191 = vcmp.lt.f32.partialorder %v190, 0.0004427343
    %v192 = vsel %vm191, %v189, %v186
    %v193 = vadd.f32 %v155, 1.0
    %v194 = vlog2.pop %v193
    %v195 = vmul.f32 %v194, 0.6931472
    %v196 = vmul.f32 -0.5, %v155
    %v197 = vadd.f32 %v196, 1.0
    %v198 = vmul.f32 %v197, %v155
    %v199 = vand.u32 2147483647, %v155
    %vm200 = vcmp.lt.f32.partialorder %v199, 0.0004427343
    %v201 = vsel %vm200, %v198, %v195
    %v202 = vadd.f32 %v157, 1.0
    %v203 = vlog2.pop %v202
    %v204 = vmul.f32 %v203, 0.6931472
    %v205 = vmul.f32 -0.5, %v157
    %v206 = vadd.f32 %v205, 1.0
    %v207 = vmul.f32 %v206, %v157
    %v208 = vand.u32 2147483647, %v157
    %vm209 = vcmp.lt.f32.partialorder %v208, 0.0004427343
    %v210 = vsel %vm209, %v207, %v204
    %v211 = vadd.f32 %v159, 1.0
    %v212 = vlog2.pop %v211
    %v213 = vmul.f32 %v212, 0.6931472
    %v214 = vmul.f32 -0.5, %v159
    %v215 = vadd.f32 %v214, 1.0
    %v216 = vmul.f32 %v215, %v159
    %v217 = vand.u32 2147483647, %v159
    %vm218 = vcmp.lt.f32.partialorder %v217, 0.0004427343
    %v219 = vsel %vm218, %v216, %v213
    %v220 = vadd.f32 %v161, 1.0
    %v221 = vlog2.pop %v220
    %v222 = vmul.f32 %v221, 0.6931472
    %v223 = vmul.f32 -0.5, %v161
    %v224 = vadd.f32 %v223, 1.0
    %v225 = vmul.f32 %v224, %v161
    %v226 = vand.u32 2147483647, %v161
    %vm227 = vcmp.lt.f32.partialorder %v226, 0.0004427343
    %v228 = vsel %vm227, %v225, %v222
    %v229 = vadd.f32 %v163, 1.0
    %v230 = vlog2.pop %v229
    %v231 = vmul.f32 %v230, 0.6931472
    %v232 = vmul.f32 -0.5, %v163
    %v233 = vadd.f32 %v232, 1.0
    %v234 = vmul.f32 %v233, %v163
    %v235 = vand.u32 2147483647, %v163
    %vm236 = vcmp.lt.f32.partialorder %v235, 0.0004427343
    %v237 = vsel %vm236, %v234, %v231
    %v238 = vadd.f32 %v165, 1.0
    %v239 = vlog2.pop %v238
    %v240 = vmul.f32 %v239, 0.6931472
    %v241 = vmul.f32 -0.5, %v165
    %v242 = vadd.f32 %v241, 1.0
    %v243 = vmul.f32 %v242, %v165
    %v244 = vand.u32 2147483647, %v165
    %vm245 = vcmp.lt.f32.partialorder %v244, 0.0004427343
    %v246 = vsel %vm245, %v243, %v240
    %v247 = vadd.f32 %v167, 1.0
    %v248 = vlog2.pop %v247
    %v249 = vmul.f32 %v248, 0.6931472
    %v250 = vmul.f32 -0.5, %v167
    %v251 = vadd.f32 %v250, 1.0
    %v252 = vmul.f32 %v251, %v167
    %v253 = vand.u32 2147483647, %v167
    %vm254 = vcmp.lt.f32.partialorder %v253, 0.0004427343
    %v255 = vsel %vm254, %v252, %v249
    %v256 = vadd.f32 %v169, 1.0
    %v257 = vlog2.pop %v256
    %v258 = vmul.f32 %v257, 0.6931472
    %v259 = vmul.f32 -0.5, %v169
    %v260 = vadd.f32 %v259, 1.0
    %v261 = vmul.f32 %v260, %v169
    %v262 = vand.u32 2147483647, %v169
    %vm263 = vcmp.lt.f32.partialorder %v262, 0.0004427343
    %v264 = vsel %vm263, %v261, %v258
    %v265 = vadd.f32 %v171, 1.0
    %v266 = vlog2.pop %v265
    %v267 = vmul.f32 %v266, 0.6931472
    %v268 = vmul.f32 -0.5, %v171
    %v269 = vadd.f32 %v268, 1.0
    %v270 = vmul.f32 %v269, %v171
    %v271 = vand.u32 2147483647, %v171
    %vm272 = vcmp.lt.f32.partialorder %v271, 0.0004427343
    %v273 = vsel %vm272, %v270, %v267
    %v274 = vadd.f32 %v173, 1.0
    %v275 = vlog2.pop %v274
    %v276 = vmul.f32 %v275, 0.6931472
    %v277 = vmul.f32 -0.5, %v173
    %v278 = vadd.f32 %v277, 1.0
    %v279 = vmul.f32 %v278, %v173
    %v280 = vand.u32 2147483647, %v173
    %vm281 = vcmp.lt.f32.partialorder %v280, 0.0004427343
    %v282 = vsel %vm281, %v279, %v276
    %v283 = vadd.f32 %v175, 1.0
    %v284 = vlog2.pop %v283
    %v285 = vmul.f32 %v284, 0.6931472
    %v286 = vmul.f32 -0.5, %v175
    %v287 = vadd.f32 %v286, 1.0
    %v288 = vmul.f32 %v287, %v175
    %v289 = vand.u32 2147483647, %v175
    %vm290 = vcmp.lt.f32.partialorder %v289, 0.0004427343
    %v291 = vsel %vm290, %v288, %v285
    %v292 = vadd.f32 %v177, 1.0
    %v293 = vlog2.pop %v292
    %v294 = vmul.f32 %v293, 0.6931472
    %v295 = vmul.f32 -0.5, %v177
    %v296 = vadd.f32 %v295, 1.0
    %v297 = vmul.f32 %v296, %v177
    %v298 = vand.u32 2147483647, %v177
    %vm299 = vcmp.lt.f32.partialorder %v298, 0.0004427343
    %v300 = vsel %vm299, %v297, %v294
    %v301 = vadd.f32 %v179, 1.0
    %v302 = vlog2.pop %v301
    %v303 = vmul.f32 %v302, 0.6931472
    %v304 = vmul.f32 -0.5, %v179
    %v305 = vadd.f32 %v304, 1.0
    %v306 = vmul.f32 %v305, %v179
    %v307 = vand.u32 2147483647, %v179
    %vm308 = vcmp.lt.f32.partialorder %v307, 0.0004427343
    %v309 = vsel %vm308, %v306, %v303
    %v310 = vadd.f32 %v181, 1.0
    %v311 = vlog2.pop %v310
    %v312 = vmul.f32 %v311, 0.6931472
    %v313 = vmul.f32 -0.5, %v181
    %v314 = vadd.f32 %v313, 1.0
    %v315 = vmul.f32 %v314, %v181
    %v316 = vand.u32 2147483647, %v181
    %vm317 = vcmp.lt.f32.partialorder %v316, 0.0004427343
    %v318 = vsel %vm317, %v315, %v312
    %v319 = vadd.f32 %v183, 1.0
    %v320 = vlog2.pop %v319
    %v321 = vmul.f32 %v320, 0.6931472
    %v322 = vmul.f32 -0.5, %v183
    %v323 = vadd.f32 %v322, 1.0
    %v324 = vmul.f32 %v323, %v183
    %v325 = vand.u32 2147483647, %v183
    %vm326 = vcmp.lt.f32.partialorder %v325, 0.0004427343
    %v327 = vsel %vm326, %v324, %v321
    %v328 = vadd.f32 %v104, %v192
    %v329 = vadd.f32 %v105, %v201
    %v330 = vadd.f32 %v106, %v210
    %v331 = vadd.f32 %v107, %v219
    %v332 = vadd.f32 %v108, %v228
    %v333 = vadd.f32 %v109, %v237
    %v334 = vadd.f32 %v110, %v246
    %v335 = vadd.f32 %v111, %v255
    %v336 = vadd.f32 %v112, %v264
    %v337 = vadd.f32 %v113, %v273
    %v338 = vadd.f32 %v114, %v282
    %v339 = vadd.f32 %v115, %v291
    %v340 = vadd.f32 %v116, %v300
    %v341 = vadd.f32 %v117, %v309
    %v342 = vadd.f32 %v118, %v318
    %v343 = vadd.f32 %v119, %v327
    %v344 = vld [vmem:[#allocation5] sm:$0xff]
    %v345 = vld [vmem:[#allocation5 + $0x8] sm:$0xff]
    %v346 = vld [vmem:[#allocation5 + $0x10] sm:$0xff]
    %v347 = vld [vmem:[#allocation5 + $0x18] sm:$0xff]
    %v348 = vld [vmem:[#allocation5 + $0x20] sm:$0xff]
    %v349 = vld [vmem:[#allocation5 + $0x28] sm:$0xff]
    %v350 = vld [vmem:[#allocation5 + $0x30] sm:$0xff]
    %v351 = vld [vmem:[#allocation5 + $0x38] sm:$0xff]
    %v352 = vld [vmem:[#allocation5 + $0x40] sm:$0xff]
    %v353 = vld [vmem:[#allocation5 + $0x48] sm:$0xff]
    %v354 = vld [vmem:[#allocation5 + $0x50] sm:$0xff]
    %v355 = vld [vmem:[#allocation5 + $0x58] sm:$0xff]
    %v356 = vld [vmem:[#allocation5 + $0x60] sm:$0xff]
    %v357 = vld [vmem:[#allocation5 + $0x68] sm:$0xff]
    %v358 = vld [vmem:[#allocation5 + $0x70] sm:$0xff]
    %v359 = vld [vmem:[#allocation5 + $0x78] sm:$0xff]
    %v360 = vld [vmem:[#allocation8] sm:$0xff]
    %v361 = vld [vmem:[#allocation8 + $0x8] sm:$0xff]
    %v362 = vld [vmem:[#allocation8 + $0x10] sm:$0xff]
    %v363 = vld [vmem:[#allocation8 + $0x18] sm:$0xff]
    %v364 = vld [vmem:[#allocation8 + $0x20] sm:$0xff]
    %v365 = vld [vmem:[#allocation8 + $0x28] sm:$0xff]
    %v366 = vld [vmem:[#allocation8 + $0x30] sm:$0xff]
    %v367 = vld [vmem:[#allocation8 + $0x38] sm:$0xff]
    %v368 = vld [vmem:[#allocation8 + $0x40] sm:$0xff]
    %v369 = vld [vmem:[#allocation8 + $0x48] sm:$0xff]
    %v370 = vld [vmem:[#allocation8 + $0x50] sm:$0xff]
    %v371 = vld [vmem:[#allocation8 + $0x58] sm:$0xff]
    %v372 = vld [vmem:[#allocation8 + $0x60] sm:$0xff]
    %v373 = vld [vmem:[#allocation8 + $0x68] sm:$0xff]
    %v374 = vld [vmem:[#allocation8 + $0x70] sm:$0xff]
    %v375 = vld [vmem:[#allocation8 + $0x78] sm:$0xff]
    %v376 = vmul.f32 %v328, %v360
    %v377 = vmul.f32 %v329, %v361
    %v378 = vmul.f32 %v330, %v362
    %v379 = vmul.f32 %v331, %v363
    %v380 = vmul.f32 %v332, %v364
    %v381 = vmul.f32 %v333, %v365
    %v382 = vmul.f32 %v334, %v366
    %v383 = vmul.f32 %v335, %v367
    %v384 = vmul.f32 %v336, %v368
    %v385 = vmul.f32 %v337, %v369
    %v386 = vmul.f32 %v338, %v370
    %v387 = vmul.f32 %v339, %v371
    %v388 = vmul.f32 %v340, %v372
    %v389 = vmul.f32 %v341, %v373
    %v390 = vmul.f32 %v342, %v374
    %v391 = vmul.f32 %v343, %v375
    %v392 = vadd.f32 %v344, %v376
    %v393 = vadd.f32 %v345, %v377
    %v394 = vadd.f32 %v346, %v378
    %v395 = vadd.f32 %v347, %v379
    %v396 = vadd.f32 %v348, %v380
    %v397 = vadd.f32 %v349, %v381
    %v398 = vadd.f32 %v350, %v382
    %v399 = vadd.f32 %v351, %v383
    %v400 = vadd.f32 %v352, %v384
    %v401 = vadd.f32 %v353, %v385
    %v402 = vadd.f32 %v354, %v386
    %v403 = vadd.f32 %v355, %v387
    %v404 = vadd.f32 %v356, %v388
    %v405 = vadd.f32 %v357, %v389
    %v406 = vadd.f32 %v358, %v390
    %v407 = vadd.f32 %v359, %v391
    %v408 = vld [vmem:[#allocation2] sm:$0xff]
    %v409 = vpack.c.bf16 %v408, %v408
    %v410 = vpack.c.bf16 %v393, %v392
    %v411 = vpack.c.bf16 %v395, %v394
    %v412 = vpack.c.bf16 %v397, %v396
    %v413 = vpack.c.bf16 %v399, %v398
    %v414 = vpack.c.bf16 %v401, %v400
    %v415 = vpack.c.bf16 %v403, %v402
    %v416 = vpack.c.bf16 %v405, %v404
    %v417 = vpack.c.bf16 %v407, %v406
    %418 = vmatpush.bf16.xpose.msra.mxu0 %v417
    %419 = vmatpush.bf16.xpose.msra.mxu0 %v416
    %420 = vmatpush.bf16.xpose.msra.mxu0 %v415
    %421 = vmatpush.bf16.xpose.msra.mxu0 %v414
    %422 = vmatpush.bf16.xpose.msra.mxu0 %v413
    %423 = vmatpush.bf16.xpose.msra.mxu0 %v412
    %424 = vmatpush.bf16.xpose.msra.mxu0 %v411
    %425 = vmatpush.bf16.xpose.msra.mxu0 %v410
    %426 = vmatmul.bf16.gmra.mxu0 %v409
    %v427 = vpop.f32.mrf.mxu0
    %v428 = vadd.f32 0.0, %v427
    %v429 = vpop.f32.mrf.mxu0
    %430 = vdwg.mxu0
    %p431 = scmp.eq.s32.totalorder 0, 0
    // Predicated region
    $region46: #{tpu_custom_call.1} parent=1 // pred_check
      %p432 = pneg %p431
    $region47: #{tpu_custom_call.1} parent=1 // pred_check_branch
      %434 = sbr.rel (%p432) target = $region49
    $region48: #{tpu_custom_call.1} parent=1 // pred_region
      %435 = vst [vmem:[#allocation10] sm:$0xff] %v428
    $region49: #{tpu_custom_call.1} parent=1 // pred_fallthru
      _
    %p436 = scmp.gt.s32.totalorder 0, 0
    // Predicated region
    $region50: #{tpu_custom_call.1} parent=1 // pred_check
      %p437 = pneg %p436
    $region51: #{tpu_custom_call.1} parent=1 // pred_check_branch
      %439 = sbr.rel (%p437) target = $region53
    $region52: #{tpu_custom_call.1} parent=1 // pred_region
      %v440 = vld [vmem:[#allocation10] sm:$0xff]
      %v441 = vadd.f32 %v440, %v428
      %442 = vst [vmem:[#allocation10] sm:$0xff] %v441
    $region53: #{tpu_custom_call.1} parent=1 // pred_fallthru
      _
    // Predicated region
    $region54: #{tpu_custom_call.1} parent=1 // pred_check
      %p443 = pneg %p431
    $region55: #{tpu_custom_call.1} parent=1 // pred_check_branch
      %445 = sbr.rel (%p443) target = $region57
    $region56: #{tpu_custom_call.1} parent=1 // pred_region
      %v446 = vld [vmem:[%s4] sm:$0x1]
      %v447 = vld [vmem:[%s5] sm:$0x1]
      %v448 = vmax.f32 %v447, 0.0
      %v449 = vand.u32 2147483647, %v447
      %v450 = vsub.f32 0.0, %v449
      %v451 = vmul.f32 %v450, 1.442695
      %v452 = vpow.pop %v451
      %v453 = vadd.f32 %v452, 1.0
      %v454 = vlog2.pop %v453
      %v455 = vmul.f32 %v454, 0.6931472
      %v456 = vmul.f32 -0.5, %v452
      %v457 = vadd.f32 %v456, 1.0
      %v458 = vmul.f32 %v457, %v452
      %v459 = vand.u32 2147483647, %v452
      %vm460 = vcmp.lt.f32.partialorder %v459, 0.0004427343
      %v461 = vsel %vm460, %v458, %v455
      %v462 = vadd.f32 %v448, %v461
      %v463 = vld [vmem:[%s6] sm:$0x1]
      %v464 = vmul.f32 %v462, %v463
      %v465 = vadd.f32 %v446, %v464
      %v466 = vld [vmem:[#allocation10] sm:$0xff]
      %v468 = vperm.slane %v465, 0
      %v470 = vadd.f32 %v466, %v468
      %471 = vst [vmem:[#allocation10] sm:$0xff] %v470
    $region57: #{tpu_custom_call.1} parent=1 // pred_fallthru
      _
    // Predicated region
    $region58: #{tpu_custom_call.1} parent=1 // pred_check
      _
    $region59: #{tpu_custom_call.1} parent=1 // pred_check_branch
      %473 = sbr.rel (0) target = $region61
    $region60: #{tpu_custom_call.1} parent=1 // pred_region
      %475 = vsyncadd [#allocation4], 0
      %s477 = sshll.u32 [#allocation10], 4
      %s478 = int_to_ptr.vmem [resolvable:$true] %s477
      %s479 = sshll.u32 %s7, 4
      %s480 = int_to_ptr.hbm [resolvable:$true] %s479
      %482 = dma.vmem_to_hbm [thread:$0]  %s478, 128, %s480, [#allocation4]
    $region61: #{tpu_custom_call.1} parent=1 // pred_fallthru
      _
    // Predicated region
    $region62: #{tpu_custom_call.1} parent=1 // pred_check
      _
    $region63: #{tpu_custom_call.1} parent=1 // pred_check_branch
      %484 = sbr.rel (0) target = $region65
    $region64: #{tpu_custom_call.1} parent=1 // pred_region
      %486 = dma.done [#allocation4], 128
    $region65: #{tpu_custom_call.1} parent=1 // pred_fallthru
      _
    %487 = vsyncpa [#allocation3], 1
    %488 = vsyncpa [#allocation6], 1
    %489 = vsyncpa [#allocation9], 1
    %490 = vsyncpa [#allocation4], 1

</llo_original>
